<compile_context>
chip_gen: v6e
topology: v6e:2x2x1
jax: 0.10.0
libtpu: 0.0.40
codegen_flags: <defaults>
</compile_context>

<pallas_src>
import functools

import jax
import jax.numpy as jnp
from jax.experimental import pallas as pl
from jax.experimental.pallas import tpu as pltpu


HALO = 128   # lane width of the tile-halo block (minimum lane-aligned block)


def _physical_vmem_bytes():
    """Per-core VMEM capacity; conservative fallback keeps v7x (64 MiB) safe."""
    try:
        return int(pltpu.get_tpu_info().vmem_capacity_bytes)
    except Exception:
        return 64 * 2 ** 20


# ----------------------------------------------------------------------------
# Pallas kernel: one (batch, output-row tile) step of a Conv2d (+ fused SiLU)
# ----------------------------------------------------------------------------
def _conv_row_kernel(x_ref, halo_ref, w_ref, b_ref, *out_refs,
                     QH, TOH, OH, apply_silu):
    """x_ref   : (1, SKp, TOH)  bf16  phase-folded input columns of this tile;
                 row index = r*Kp + wp*Cin + ci (stride phase r, padded col wp).
       halo_ref: (1, SKp, HALO) bf16  next HALO columns (tile halo).
       w_ref   : (QH, OWCout, SKp) bf16  stride-folded, width-expanded weights.
       b_ref   : (OWCout, 1) f32        bias tiled over the OW positions.
       out_refs: feat (1, OWCout, TOH)  pre-activation, lane-dense
                 act  (1, OWCout, TOH)  SiLU(feat), zero-masked past OH
    """
    t = pl.program_id(1)
    feat_ref = out_refs[0]

    cur = x_ref[0]                                            # (SKp, TOH)
    acc = jnp.dot(w_ref[0], cur, preferred_element_type=jnp.float32)
    if QH > 1:
        # One lane-aligned concat; the QH-1 shifted windows below are the only
        # lane-misaligned slices per grid step (vs KH in the naive form).
        ext = jnp.concatenate([cur, halo_ref[0]], axis=1)     # (SKp, TOH+HALO)
        for qh in range(1, QH):
            acc = acc + jnp.dot(w_ref[qh], ext[:, qh:qh + TOH],
                                preferred_element_type=jnp.float32)
    acc = acc + b_ref[...]                                    # (OWCout, TOH)

    feat_ref[0, :, :] = acc.astype(feat_ref.dtype)            # pre-activation

    if apply_silu:
        act_ref = out_refs[1]
        col = jax.lax.broadcasted_iota(jnp.int32, (1, TOH), 1)
        valid = col < (OH - t * TOH)        # zero tile padding so the consumer
        silu = acc * jax.nn.sigmoid(acc)    # can treat it as H padding
        act_ref[0, :, :] = jnp.where(valid, silu, 0.0).astype(act_ref.dtype)


# ----------------------------------------------------------------------------
# Per-layer wrapper (glue: one pad + one phase-split relayout, no math)
# ----------------------------------------------------------------------------
def conv2d_layer(x_cf, H, W, w_hwio, bias, stride, pad, *, apply_silu):
    """x_cf: (B, W*Cin, >=H) channel-first rows, x_cf[b, w*Cin+ci, h] = x[b,ci,h,w];
    any columns beyond H must be zero (the producer guarantees this).

    Returns (feature NCHW f32, activated output in the same channel-first
    layout (lane-padded, zero past OH) or None, (OH, OW))."""
    B = x_cf.shape[0]
    KH, KW, Cin, Cout = w_hwio.shape
    assert x_cf.shape[1] == W * Cin and x_cf.shape[2] >= H
    SH = SW = stride
    Wp = W + 2 * pad
    OW = (Wp - KW) // SW + 1
    OH = (H + 2 * pad - KH) // SH + 1
    Kp = Wp * Cin
    SKp = SH * Kp
    OWCout = OW * Cout
    QH = -(-KH // SH)                                  # ceil(KH / SH)
    assert QH - 1 <= HALO
    feat_dtype = jnp.bfloat16 if apply_silu else jnp.float32
    feat_bytes = 2 if apply_silu else 4

    # ---- pick the output-row tile from the per-generation VMEM budget ----
    phys_vmem = _physical_vmem_bytes()
    budget = int(0.55 * phys_vmem)

    def vmem_est(toh):
        inp = 2 * SKp * (toh + HALO) * 2                       # dbl-buffered in
        wgt = 2 * QH * OWCout * SKp * 2 + 2 * OWCout * 4       # dbl-buffered w,b
        outb = 2 * OWCout * toh * (feat_bytes + (2 if apply_silu else 0))
        scr = OWCout * toh * 4 + SKp * (toh + HALO) * 2        # acc + concat
        return inp + wgt + outb + scr

    oh_ceil = -(-OH // HALO) * HALO
    TOH = HALO
    for cand in (1024, 768, 512, 384, 256, 128):
        if cand <= max(HALO, oh_ceil) and vmem_est(cand) <= budget:
            TOH = cand
            break
    n_tiles = -(-OH // TOH)
    OH_pad = n_tiles * TOH
    LQ = OH_pad + HALO                # phase-plane lane length
    L = LQ * SH                       # padded input columns consumed

    # ---- input prep: one pad + one phase-split relayout, all in bf16 ----
    # TODO(synk): the phase-split transpose could also be removed by doing the
    # stride-phase split with manual HBM DMAs (memory_space=pl.ANY).
    xb = x_cf.astype(jnp.bfloat16)
    phys = xb.shape[2]
    bottom = L - pad - phys
    xk = jnp.pad(xb, ((0, 0), (pad * Cin, pad * Cin),
                      (pad, max(0, bottom))))[:, :, :L]
    xp = (xk.reshape(B, Kp, LQ, SH)
            .transpose(0, 3, 1, 2)
            .reshape(B, SKp, LQ))                              # (B, SKp, LQ)

    # ---- stride-folded, width-expanded, transposed bf16 weights ----
    blk = w_hwio.reshape(KH, KW * Cin, Cout).astype(jnp.float32)
    w_exp = jnp.zeros((KH, Kp, OWCout), jnp.float32)
    for ow in range(OW):
        w_exp = jax.lax.dynamic_update_slice(
            w_exp, blk, (0, ow * SW * Cin, ow * Cout))
    w_exp = jnp.pad(w_exp, ((0, QH * SH - KH), (0, 0), (0, 0)))
    w_fold = w_exp.reshape(QH, SH * Kp, OWCout)                # row = r*Kp + k
    w_t = jnp.transpose(w_fold, (0, 2, 1)).astype(jnp.bfloat16)
    b_e = jnp.tile(bias.astype(jnp.float32), OW).reshape(OWCout, 1)

    kern = functools.partial(_conv_row_kernel, QH=QH, TOH=TOH, OH=OH,
                             apply_silu=apply_silu)

    out_shape = [jax.ShapeDtypeStruct((B, OWCout, OH_pad), feat_dtype)]
    out_specs = [pl.BlockSpec((1, OWCout, TOH), lambda b, t: (b, 0, t))]
    if apply_silu:
        out_shape.append(jax.ShapeDtypeStruct((B, OWCout, OH_pad), jnp.bfloat16))
        out_specs.append(pl.BlockSpec((1, OWCout, TOH), lambda b, t: (b, 0, t)))

    halo_blocks = TOH // HALO
    vmem_cap = max(32 * 2 ** 20, min(int(0.8 * phys_vmem), 100 * 2 ** 20))
    vmem_limit = int(min(vmem_cap, max(32 * 2 ** 20, int(1.35 * vmem_est(TOH)))))

    outs = pl.pallas_call(
        kern,
        out_shape=tuple(out_shape),
        grid=(B, n_tiles),
        in_specs=[
            pl.BlockSpec((1, SKp, TOH), lambda b, t: (b, 0, t)),
            pl.BlockSpec((1, SKp, HALO),
                         lambda b, t: (b, 0, (t + 1) * halo_blocks)),
            pl.BlockSpec((QH, OWCout, SKp), lambda b, t: (0, 0, 0)),
            pl.BlockSpec((OWCout, 1), lambda b, t: (0, 0)),
        ],
        out_specs=tuple(out_specs),
        compiler_params=pltpu.CompilerParams(
            dimension_semantics=("parallel", "parallel"),
            vmem_limit_bytes=vmem_limit),
    )(xp, xp, w_t, b_e)

    if apply_silu:
        feat, act = outs
    else:
        feat = outs[0] if isinstance(outs, (tuple, list)) else outs
        act = None

    # feature -> NCHW f32 (layout required by the torch module's return value;
    # the big kernel store above stays lane-dense, this is a small fix-up pass)
    feat_nchw = (feat[:, :, :OH].astype(jnp.float32)
                     .reshape(B, OW, Cout, OH)
                     .transpose(0, 2, 3, 1))
    return feat_nchw, act, (OH, OW)


# ----------------------------------------------------------------------------
# Module forward (orchestration)
# ----------------------------------------------------------------------------
def shared_conv_net(x_cf, H, W, layer_params, kernel_size, stride):
    B = x_cf.shape[0]
    features = []
    h_cf, hH, hW = x_cf, H, W
    for (w, b) in layer_params[:-1]:
        feat, h_cf, (hH, hW) = conv2d_layer(
            h_cf, hH, hW, w, b, stride, kernel_size // 2, apply_silu=True)
        features.append(feat)
    wf, bf = layer_params[-1]
    feat, _, _ = conv2d_layer(h_cf, hH, hW, wf, bf, 1, 0, apply_silu=False)
    features.append(feat)
    score = jnp.mean(feat.reshape(B, -1), axis=-1)      # x.reshape(B,-1).mean(-1)
    return score, features


def multi_period_discriminator(x, params, periods, kernel_size, stride):
    """x: (B, C, T).  Returns (score: (B,), features: list of NCHW arrays)."""
    B, C, T = x.shape
    score = jnp.zeros((B,), jnp.float32)
    features = []
    for layer_params, n in zip(params, periods):
        padT = (n - T % n) % n
        xf = jnp.pad(x, ((0, 0), (0, 0), (0, padT))).reshape(B, C, -1, n)  # fold
        H = xf.shape[2]
        x_cf = xf.transpose(0, 3, 1, 2).reshape(B, n * C, H)   # (B, W*C, H)
        s, feats = shared_conv_net(x_cf, H, n, layer_params, kernel_size, stride)
        score = score + s
        features.extend(feats)
    return score, features


def make_params(key, in_channels, periods, capacity, n_layers, kernel_size,
                out_size):
    channels = [in_channels] + [capacity * (2 ** i) for i in range(n_layers)]
    params = []
    for _ in periods:
        layer_params = []
        for i in range(n_layers):
            key, k1, k2 = jax.random.split(key, 3)
            fan_in = channels[i] * kernel_size * kernel_size
            w = jax.random.normal(
                k1, (kernel_size, kernel_size, channels[i], channels[i + 1]),
                jnp.float32) / jnp.sqrt(jnp.float32(fan_in))
            b = 0.01 * jax.random.normal(k2, (channels[i + 1],), jnp.float32)
            layer_params.append((w, b))
        key, k1, k2 = jax.random.split(key, 3)
        wf = jax.random.normal(k1, (1, 1, channels[-1], out_size),
                               jnp.float32) / jnp.sqrt(jnp.float32(channels[-1]))
        bf = 0.01 * jax.random.normal(k2, (out_size,), jnp.float32)
        layer_params.append((wf, bf))
        params.append(layer_params)
    return params


# ----------------------------------------------------------------------------
# Pure-JAX f32 reference (loose numerical sanity check; kernel uses bf16)
# ----------------------------------------------------------------------------
def reference_forward(x, params, periods, kernel_size, stride):
    B = x.shape[0]
    score = jnp.zeros((B,), jnp.float32)
    feats = []
    for layer_params, n in zip(params, periods):
        padT = (n - x.shape[-1] % n) % n
        h = jnp.pad(x, ((0, 0), (0, 0), (0, padT))).reshape(B, x.shape[1], -1, n)
        for li, (w, b) in enumerate(layer_params):
            last = li == len(layer_params) - 1
            s = 1 if last else stride
            p = 0 if last else kernel_size // 2
            h = jax.lax.conv_general_dilated(
                h, w, window_strides=(s, s), padding=[(p, p), (p, p)],
                dimension_numbers=("NCHW", "HWIO", "NCHW"),
                precision=jax.lax.Precision.HIGHEST) + b.reshape(1, -1, 1, 1)
            feats.append(h)
            if not last:
                h = h * jax.nn.sigmoid(h)
        score = score + jnp.mean(h.reshape(B, -1), axis=-1)
    return score, feats


if __name__ == "__main__":
    in_channels = 2
    periods = (2, 3)
    capacity = 4
    n_layers = 2
    kernel_size = 7
    stride = 2
    out_size = 1
    B, T = 2, 64

    key = jax.random.PRNGKey(0)
    kx, kp = jax.random.split(key)
    x = jax.random.normal(kx, (B, in_channels, T), jnp.float32)
    params = make_params(kp, in_channels, periods, capacity, n_layers,
                         kernel_size, out_size)

    score, features = multi_period_discriminator(x, params, periods,
                                                 kernel_size, stride)
    score = jax.block_until_ready(score)
    features = [jax.block_until_ready(f) for f in features]

    assert score.shape == (B,)
    assert len(features) == len(periods) * (n_layers + 1)

    # loose numerical check vs f32 reference (kernel uses bf16 matmul inputs
    # and bf16 hidden-feature storage)
    ref_score, ref_feats = reference_forward(x, params, periods, kernel_size,
                                             stride)
    assert float(jnp.max(jnp.abs(score - ref_score))) < 1e-1
    for f, rf in zip(features, ref_feats):
        assert f.shape == rf.shape, (f.shape, rf.shape)
        assert float(jnp.max(jnp.abs(f - rf))) < 1e-1

    print("KERNEL_OK")
</pallas_src>

<mosaic_0001>
module attributes {stable_mosaic.version = 11 : i64} {
  func.func @_conv_row_kernel(%arg0: i32, %arg1: i32, %arg2: memref<1x32x128xbf16, #tpu.memory_space<vmem>>, %arg3: memref<1x32x128xbf16, #tpu.memory_space<vmem>>, %arg4: memref<4x4x32xbf16, #tpu.memory_space<vmem>>, %arg5: memref<4x1xf32, #tpu.memory_space<vmem>>, %arg6: memref<1x4x128xbf16, #tpu.memory_space<vmem>>, %arg7: memref<1x4x128xbf16, #tpu.memory_space<vmem>>) attributes {dimension_semantics = [#tpu.dimension_semantics<parallel>, #tpu.dimension_semantics<parallel>], iteration_bounds = array<i64: 2, 1>, scalar_prefetch = 0 : i64, scratch_operands = 0 : i64, tpu.core_type = #tpu.core_type<tc>, window_params = [{transform_indices = @transform_0, window_bounds = array<i64: 1, 32, 128>}, {transform_indices = @transform_1, window_bounds = array<i64: 1, 32, 128>}, {pipeline_mode = #tpu.pipeline_mode<synchronous>, transform_indices = @transform_2, window_bounds = array<i64: 4, 4, 32>}, {pipeline_mode = #tpu.pipeline_mode<synchronous>, transform_indices = @transform_3, window_bounds = array<i64: 4, 1>}, {transform_indices = @transform_4, window_bounds = array<i64: 1, 4, 128>}, {transform_indices = @transform_5, window_bounds = array<i64: 1, 4, 128>}]} {
    %c0 = arith.constant 0 : index
    %c0_0 = arith.constant 0 : index
    %c0_1 = arith.constant 0 : index
    %0 = vector.load %arg2[%c0, %c0_0, %c0_1] : memref<1x32x128xbf16, #tpu.memory_space<vmem>>, vector<1x32x128xbf16>
    %1 = vector.shape_cast %0 : vector<1x32x128xbf16> to vector<32x128xbf16>
    %c0_2 = arith.constant 0 : index
    %c0_3 = arith.constant 0 : index
    %c0_4 = arith.constant 0 : index
    %2 = vector.load %arg4[%c0_2, %c0_3, %c0_4] : memref<4x4x32xbf16, #tpu.memory_space<vmem>>, vector<1x4x32xbf16>
    %3 = vector.shape_cast %2 : vector<1x4x32xbf16> to vector<4x32xbf16>
    %cst = arith.constant dense<0.000000e+00> : vector<4x128xf32>
    %4 = tpu.matmul %3, %1, %cst {dimension_numbers = #tpu.dot_dimension_numbers<[1], [0], [0], [1], [0, 0, 1, 1], [], []>} : vector<4x32xbf16>, vector<32x128xbf16>, vector<4x128xf32> -> vector<4x128xf32>
    %c0_5 = arith.constant 0 : index
    %c0_6 = arith.constant 0 : index
    %c0_7 = arith.constant 0 : index
    %5 = vector.load %arg3[%c0_5, %c0_6, %c0_7] : memref<1x32x128xbf16, #tpu.memory_space<vmem>>, vector<1x32x128xbf16>
    %6 = vector.shape_cast %5 : vector<1x32x128xbf16> to vector<32x128xbf16>
    %7 = tpu.concatenate %1, %6 in 1 : vector<32x128xbf16>, vector<32x128xbf16> -> vector<32x256xbf16>
    %c1 = arith.constant 1 : index
    %c0_8 = arith.constant 0 : index
    %c0_9 = arith.constant 0 : index
    %8 = vector.load %arg4[%c1, %c0_8, %c0_9] : memref<4x4x32xbf16, #tpu.memory_space<vmem>>, vector<1x4x32xbf16>
    %9 = vector.shape_cast %8 : vector<1x4x32xbf16> to vector<4x32xbf16>
    %10 = vector.extract_strided_slice %7 {offsets = [0, 1], sizes = [32, 128], strides = [1, 1]} : vector<32x256xbf16> to vector<32x128xbf16>
    %cst_10 = arith.constant dense<0.000000e+00> : vector<4x128xf32>
    %11 = tpu.matmul %9, %10, %cst_10 {dimension_numbers = #tpu.dot_dimension_numbers<[1], [0], [0], [1], [0, 0, 1, 1], [], []>} : vector<4x32xbf16>, vector<32x128xbf16>, vector<4x128xf32> -> vector<4x128xf32>
    %12 = arith.addf %4, %11 : vector<4x128xf32>
    %c2 = arith.constant 2 : index
    %c0_11 = arith.constant 0 : index
    %c0_12 = arith.constant 0 : index
    %13 = vector.load %arg4[%c2, %c0_11, %c0_12] : memref<4x4x32xbf16, #tpu.memory_space<vmem>>, vector<1x4x32xbf16>
    %14 = vector.shape_cast %13 : vector<1x4x32xbf16> to vector<4x32xbf16>
    %15 = vector.extract_strided_slice %7 {offsets = [0, 2], sizes = [32, 128], strides = [1, 1]} : vector<32x256xbf16> to vector<32x128xbf16>
    %cst_13 = arith.constant dense<0.000000e+00> : vector<4x128xf32>
    %16 = tpu.matmul %14, %15, %cst_13 {dimension_numbers = #tpu.dot_dimension_numbers<[1], [0], [0], [1], [0, 0, 1, 1], [], []>} : vector<4x32xbf16>, vector<32x128xbf16>, vector<4x128xf32> -> vector<4x128xf32>
    %17 = arith.addf %12, %16 : vector<4x128xf32>
    %c3 = arith.constant 3 : index
    %c0_14 = arith.constant 0 : index
    %c0_15 = arith.constant 0 : index
    %18 = vector.load %arg4[%c3, %c0_14, %c0_15] : memref<4x4x32xbf16, #tpu.memory_space<vmem>>, vector<1x4x32xbf16>
    %19 = vector.shape_cast %18 : vector<1x4x32xbf16> to vector<4x32xbf16>
    %20 = vector.extract_strided_slice %7 {offsets = [0, 3], sizes = [32, 128], strides = [1, 1]} : vector<32x256xbf16> to vector<32x128xbf16>
    %cst_16 = arith.constant dense<0.000000e+00> : vector<4x128xf32>
    %21 = tpu.matmul %19, %20, %cst_16 {dimension_numbers = #tpu.dot_dimension_numbers<[1], [0], [0], [1], [0, 0, 1, 1], [], []>} : vector<4x32xbf16>, vector<32x128xbf16>, vector<4x128xf32> -> vector<4x128xf32>
    %22 = arith.addf %17, %21 : vector<4x128xf32>
    %c0_17 = arith.constant 0 : index
    %c0_18 = arith.constant 0 : index
    %23 = vector.load %arg5[%c0_17, %c0_18] : memref<4x1xf32, #tpu.memory_space<vmem>>, vector<4x1xf32>
    %24 = vector.broadcast %23 : vector<4x1xf32> to vector<4x128xf32>
    %25 = arith.addf %22, %24 : vector<4x128xf32>
    %26 = arith.truncf %25 : vector<4x128xf32> to vector<4x128xbf16>
    %c0_19 = arith.constant 0 : index
    %c0_20 = arith.constant 0 : index
    %c0_21 = arith.constant 0 : index
    %27 = vector.load %arg6[%c0_19, %c0_20, %c0_21] : memref<1x4x128xbf16, #tpu.memory_space<vmem>>, vector<1x4x128xbf16>
    %28 = vector.shape_cast %27 : vector<1x4x128xbf16> to vector<4x128xbf16>
    %29 = vector.shape_cast %26 : vector<4x128xbf16> to vector<1x4x128xbf16>
    tpu.vector_store %arg6[%c0_19, %c0_20, %c0_21], %29 {strides = array<i32>} : memref<1x4x128xbf16, #tpu.memory_space<vmem>>, vector<1x4x128xbf16>,
    %30 = tpu.iota {dimensions = array<i32: 1>} : vector<1x128xi32>
    %c128_i32 = arith.constant 128 : i32
    %31 = arith.muli %arg1, %c128_i32 : i32
    %c16_i32 = arith.constant 16 : i32
    %32 = arith.subi %c16_i32, %31 : i32
    %33 = vector.broadcast %32 : i32 to vector<1x128xi32>
    %34 = arith.cmpi slt, %30, %33 : vector<1x128xi32>
    %35 = arith.negf %25 : vector<4x128xf32>
    %36 = math.exp %35 : vector<4x128xf32>
    %cst_22 = arith.constant 1.000000e+00 : f32
    %37 = vector.broadcast %cst_22 : f32 to vector<4x128xf32>
    %38 = arith.addf %37, %36 : vector<4x128xf32>
    %39 = arith.divf %37, %38 : vector<4x128xf32>
    %40 = arith.mulf %25, %39 : vector<4x128xf32>
    %cst_23 = arith.constant 0.000000e+00 : f32
    %41 = vector.shape_cast %34 : vector<1x128xi1> to vector<1x128xi1>
    %42 = vector.broadcast %41 : vector<1x128xi1> to vector<4x128xi1>
    %43 = vector.broadcast %cst_23 : f32 to vector<4x128xf32>
    %44 = arith.select %42, %40, %43 : vector<4x128xi1>, vector<4x128xf32>
    %45 = arith.truncf %44 : vector<4x128xf32> to vector<4x128xbf16>
    %c0_24 = arith.constant 0 : index
    %c0_25 = arith.constant 0 : index
    %c0_26 = arith.constant 0 : index
    %46 = vector.load %arg7[%c0_24, %c0_25, %c0_26] : memref<1x4x128xbf16, #tpu.memory_space<vmem>>, vector<1x4x128xbf16>
    %47 = vector.shape_cast %46 : vector<1x4x128xbf16> to vector<4x128xbf16>
    %48 = vector.shape_cast %45 : vector<4x128xbf16> to vector<1x4x128xbf16>
    tpu.vector_store %arg7[%c0_24, %c0_25, %c0_26], %48 {strides = array<i32>} : memref<1x4x128xbf16, #tpu.memory_space<vmem>>, vector<1x4x128xbf16>,
    return
  }
  func.func @transform_0(%arg0: i32, %arg1: i32) -> (i32, i32, i32) {
    %c0_i32 = arith.constant 0 : i32
    %c0_i32_0 = arith.constant 0 : i32
    return %arg0, %c0_i32, %arg1 : i32, i32, i32
  }
  func.func @transform_1(%arg0: i32, %arg1: i32) -> (i32, i32, i32) {
    %c1_i32 = arith.constant 1 : i32
    %0 = arith.addi %arg1, %c1_i32 : i32
    %c1_i32_0 = arith.constant 1 : i32
    %1 = arith.muli %0, %c1_i32_0 : i32
    %c0_i32 = arith.constant 0 : i32
    %c0_i32_1 = arith.constant 0 : i32
    return %arg0, %c0_i32, %1 : i32, i32, i32
  }
  func.func @transform_2(%arg0: i32, %arg1: i32) -> (i32, i32, i32) {
    %c0_i32 = arith.constant 0 : i32
    %c0_i32_0 = arith.constant 0 : i32
    %c0_i32_1 = arith.constant 0 : i32
    %c0_i32_2 = arith.constant 0 : i32
    return %c0_i32, %c0_i32_0, %c0_i32_1 : i32, i32, i32
  }
  func.func @transform_3(%arg0: i32, %arg1: i32) -> (i32, i32) {
    %c0_i32 = arith.constant 0 : i32
    %c0_i32_0 = arith.constant 0 : i32
    %c0_i32_1 = arith.constant 0 : i32
    return %c0_i32, %c0_i32_0 : i32, i32
  }
  func.func @transform_4(%arg0: i32, %arg1: i32) -> (i32, i32, i32) {
    %c0_i32 = arith.constant 0 : i32
    %c0_i32_0 = arith.constant 0 : i32
    return %arg0, %c0_i32, %arg1 : i32, i32, i32
  }
  func.func @transform_5(%arg0: i32, %arg1: i32) -> (i32, i32, i32) {
    %c0_i32 = arith.constant 0 : i32
    %c0_i32_0 = arith.constant 0 : i32
    return %arg0, %c0_i32, %arg1 : i32, i32, i32
  }
}

</mosaic_0001>

<llo_original>
// kernel: tpu_custom_call.1
$region0: #{tpu_custom_call.1}
  #allocation0 [shape = 'u32[]', space=smem, size = 0x4, offset = 0x4, fixed_abs, tag = 'smem constant byte address 0x4 - core index']
  #allocation1 [shape = 'u32[144,128]{1,0:T(1,128)}', space=vmem, size = 0x12000, scoped, tag = 'internal scratch']
  %s0 = inlined_call_operand.hbm [shape: bf16[2,32,256], index: 0, kind: input, shape index: {}]
  %s1 = inlined_call_operand.hbm [shape: bf16[2,32,256], index: 1, kind: input, shape index: {}]
  %s2 = inlined_call_operand.vmem [shape: bf16[4,4,32], index: 2, kind: input, shape index: {}]
  %s3 = inlined_call_operand.vmem [shape: f32[4,1], index: 3, kind: input, shape index: {}]
  %s4 = inlined_call_operand.hbm [shape: bf16[2,4,128], index: 4, kind: output, shape index: {0}]
  %s5 = inlined_call_operand.hbm [shape: bf16[2,4,128], index: 5, kind: output, shape index: {1}]
  %6 = xla_tuple %s4, %s5
  %s7 = sld [smem:[#allocation0]]
  $region65: #{tpu_custom_call.1} parent=0
    _
  %s9 = ssub.s32 1, %s7
  %s10 = scalar_select 0, %s9, %s7
  $region1: #{tpu_custom_call.1} parent=0
    #allocation2 [shape = 'u8[16384]{0}', space=vmem, size = 0x4000, scoped, tag = 'input window, operand 0']
    #allocation3 [shape = 's32[2]{0}', space=sflag, size = 0x8, scoped, tag = 'scoped memory for tpu_custom_call.1']
    #allocation4 [shape = 's32[2]{0}', space=sflag, size = 0x8, scoped, tag = 'scoped memory for tpu_custom_call.1']
    #allocation5 [shape = 'u8[16384]{0}', space=vmem, size = 0x4000, scoped, tag = 'input window, operand 1']
    #allocation6 [shape = 's32[2]{0}', space=sflag, size = 0x8, scoped, tag = 'scoped memory for tpu_custom_call.1']
    #allocation7 [shape = 'u8[2048]{0}', space=vmem, size = 0x800, scoped, tag = 'output window, operand 0']
    #allocation8 [shape = 'u8[2048]{0}', space=vmem, size = 0x800, scoped, tag = 'output window, operand 1']
    #allocation9 [shape = 's32[2]{0}', space=sflag, size = 0x8, scoped, tag = 'scoped memory for tpu_custom_call.1']
    %11 = vsyncpa [#allocation3], 0
    %s12 = scalar_lea.sflag [#allocation3], 1
    %13 = vsyncpa %s12, 0
    %14 = vsyncpa [#allocation6], 0
    %s15 = scalar_lea.sflag [#allocation6], 1
    %16 = vsyncpa %s15, 0
    %17 = vsyncpa [#allocation4], 0
    %s18 = scalar_lea.sflag [#allocation4], 1
    %19 = vsyncpa %s18, 0
    %20 = vsyncpa [#allocation9], 0
    %s21 = scalar_lea.sflag [#allocation9], 1
    %22 = vsyncpa %s21, 0
    loop: start=0, step=1, limit=4
    $region2: #{tpu_custom_call.1} parent=1 // loop_pre_header
      _
    $region3: #{tpu_custom_call.1} parent=1 // loop_header
      %s24 = sphi 0, %s28
      %p25 = scmp.ge.s32.totalorder %s24, 4
      %s31 = sphi 0, %s43
      %s32 = sphi 0, %s39
      %s33 = sphi 0, %s31
      %s34 = sphi 0, %s32
      %s35 = sphi 0, %s33
      %s36 = sphi 0, %s34
      %s48 = sphi 0, %s50
      %s51 = sphi 0, %s48
      %s52 = sphi 0, %s51
      %s68 = sphi 0, %s52
      %s78 = sphi 0, %s80
      %s81 = sphi 0, %s78
      %s82 = sphi 0, %s81
      %s98 = sphi 0, %s82
      %s102 = sphi 0, %s102
      %s104 = sphi 0, %s102
      %s105 = sphi 0, %s104
      %s119 = sphi 0, %s105
      %s123 = sphi 0, %s123
      %s125 = sphi 0, %s123
      %s126 = sphi 0, %s125
      %s140 = sphi 0, %s126
      %s148 = sphi 0, %s150
      %s151 = sphi 0, %s148
      %s152 = sphi 0, %s151
      %s168 = sphi 0, %s152
      %s176 = sphi 0, %s178
      %s179 = sphi 0, %s176
      %s180 = sphi 0, %s179
      %s196 = sphi 0, %s180
    $region4: #{tpu_custom_call.1} parent=1 // loop_header_branch
      %27 = sbr.rel (%p25) target = $region8
    $region5: #{tpu_custom_call.1} parent=1 // loop_body
      %s29 = ssub.s32 %s24, 1
      %s30 = ssub.s32 %s24, 2
      %s37 = sadd.s32 1, %s32
      %p38 = scmp.ge.s32.totalorder %s37, 1
      %s39 = scalar_select %p38, 0, %s37
      %s40 = sadd.s32 1, %s31
      %s41 = scalar_select %p38, %s40, %s31
      %p42 = scmp.ge.s32.totalorder %s41, 2
      %s43 = scalar_select %p42, 0, %s41
      %s44 = ssub.s32 %s31, %s43
      %s45 = ssub.s32 %s32, %s39
      %s46 = sor.u32 %s44, %s45
      %p47 = scmp.eq.s32.totalorder %s46, 0
      %s49 = sadd.s32 %s48, 1
      %s50 = scalar_select %p47, %s48, %s49
      %p53 = pneg %p47
      %p54 = scmp.eq.s32.totalorder %s24, 1
      %p55 = por %p53, %p54
      %p56 = scmp.ne.s32.totalorder %s48, %s51
      %p57 = scmp.eq.s32.totalorder %s24, 0
      %p58 = por %p56, %p57
      %p59 = scmp.ne.s32.totalorder %s48, %s51
      %p60 = scmp.eq.s32.totalorder %s29, 1
      %p61 = por %p59, %p60
      %p62 = scmp.ne.s32.totalorder %s51, %s52
      %p63 = scmp.eq.s32.totalorder %s29, 0
      %p64 = por %p62, %p63
      %p65 = scmp.ne.s32.totalorder %s51, %s52
      %p66 = scmp.eq.s32.totalorder %s30, 1
      %p67 = por %p65, %p66
      %p69 = scmp.ne.s32.totalorder %s52, %s68
      %p70 = scmp.eq.s32.totalorder %s30, 0
      %p71 = por %p69, %p70
      %s72 = sadd.s32 %s32, 1
      %s73 = sadd.s32 %s39, 1
      %s74 = ssub.s32 %s31, %s43
      %s75 = ssub.s32 %s72, %s73
      %s76 = sor.u32 %s74, %s75
      %p77 = scmp.eq.s32.totalorder %s76, 0
      %s79 = sadd.s32 %s78, 1
      %s80 = scalar_select %p77, %s78, %s79
      %p83 = pneg %p77
      %p84 = scmp.eq.s32.totalorder %s24, 1
      %p85 = por %p83, %p84
      %p86 = scmp.ne.s32.totalorder %s78, %s81
      %p87 = scmp.eq.s32.totalorder %s24, 0
      %p88 = por %p86, %p87
      %p89 = scmp.ne.s32.totalorder %s78, %s81
      %p90 = scmp.eq.s32.totalorder %s29, 1
      %p91 = por %p89, %p90
      %p92 = scmp.ne.s32.totalorder %s81, %s82
      %p93 = scmp.eq.s32.totalorder %s29, 0
      %p94 = por %p92, %p93
      %p95 = scmp.ne.s32.totalorder %s81, %s82
      %p96 = scmp.eq.s32.totalorder %s30, 1
      %p97 = por %p95, %p96
      %p99 = scmp.ne.s32.totalorder %s82, %s98
      %p100 = scmp.eq.s32.totalorder %s30, 0
      %p101 = por %p99, %p100
      %s103 = sadd.s32 %s102, 1
      %p106 = scmp.eq.s32.totalorder %s24, 1
      %p107 = scmp.ne.s32.totalorder %s102, %s104
      %p108 = scmp.eq.s32.totalorder %s24, 0
      %p109 = por %p107, %p108
      %p110 = scmp.ne.s32.totalorder %s102, %s104
      %p111 = scmp.eq.s32.totalorder %s29, 1
      %p112 = por %p110, %p111
      %p113 = scmp.ne.s32.totalorder %s104, %s105
      %p114 = scmp.eq.s32.totalorder %s29, 0
      %p115 = por %p113, %p114
      %p116 = scmp.ne.s32.totalorder %s104, %s105
      %p117 = scmp.eq.s32.totalorder %s30, 1
      %p118 = por %p116, %p117
      %p120 = scmp.ne.s32.totalorder %s105, %s119
      %p121 = scmp.eq.s32.totalorder %s30, 0
      %p122 = por %p120, %p121
      %s124 = sadd.s32 %s123, 1
      %p127 = scmp.eq.s32.totalorder %s24, 1
      %p128 = scmp.ne.s32.totalorder %s123, %s125
      %p129 = scmp.eq.s32.totalorder %s24, 0
      %p130 = por %p128, %p129
      %p131 = scmp.ne.s32.totalorder %s123, %s125
      %p132 = scmp.eq.s32.totalorder %s29, 1
      %p133 = por %p131, %p132
      %p134 = scmp.ne.s32.totalorder %s125, %s126
      %p135 = scmp.eq.s32.totalorder %s29, 0
      %p136 = por %p134, %p135
      %p137 = scmp.ne.s32.totalorder %s125, %s126
      %p138 = scmp.eq.s32.totalorder %s30, 1
      %p139 = por %p137, %p138
      %p141 = scmp.ne.s32.totalorder %s126, %s140
      %p142 = scmp.eq.s32.totalorder %s30, 0
      %p143 = por %p141, %p142
      %s144 = ssub.s32 %s31, %s43
      %s145 = ssub.s32 %s32, %s39
      %s146 = sor.u32 %s144, %s145
      %p147 = scmp.eq.s32.totalorder %s146, 0
      %s149 = sadd.s32 %s148, 1
      %s150 = scalar_select %p147, %s148, %s149
      %p153 = pneg %p147
      %p154 = scmp.eq.s32.totalorder %s24, 1
      %p155 = por %p153, %p154
      %p156 = scmp.ne.s32.totalorder %s148, %s151
      %p157 = scmp.eq.s32.totalorder %s24, 0
      %p158 = por %p156, %p157
      %p159 = scmp.ne.s32.totalorder %s148, %s151
      %p160 = scmp.eq.s32.totalorder %s29, 1
      %p161 = por %p159, %p160
      %p162 = scmp.ne.s32.totalorder %s151, %s152
      %p163 = scmp.eq.s32.totalorder %s29, 0
      %p164 = por %p162, %p163
      %p165 = scmp.ne.s32.totalorder %s151, %s152
      %p166 = scmp.eq.s32.totalorder %s30, 1
      %p167 = por %p165, %p166
      %p169 = scmp.ne.s32.totalorder %s152, %s168
      %p170 = scmp.eq.s32.totalorder %s30, 0
      %p171 = por %p169, %p170
      %s172 = ssub.s32 %s31, %s43
      %s173 = ssub.s32 %s32, %s39
      %s174 = sor.u32 %s172, %s173
      %p175 = scmp.eq.s32.totalorder %s174, 0
      %s177 = sadd.s32 %s176, 1
      %s178 = scalar_select %p175, %s176, %s177
      %p181 = pneg %p175
      %p182 = scmp.eq.s32.totalorder %s24, 1
      %p183 = por %p181, %p182
      %p184 = scmp.ne.s32.totalorder %s176, %s179
      %p185 = scmp.eq.s32.totalorder %s24, 0
      %p186 = por %p184, %p185
      %p187 = scmp.ne.s32.totalorder %s176, %s179
      %p188 = scmp.eq.s32.totalorder %s29, 1
      %p189 = por %p187, %p188
      %p190 = scmp.ne.s32.totalorder %s179, %s180
      %p191 = scmp.eq.s32.totalorder %s29, 0
      %p192 = por %p190, %p191
      %p193 = scmp.ne.s32.totalorder %s179, %s180
      %p194 = scmp.eq.s32.totalorder %s30, 1
      %p195 = por %p193, %p194
      %p197 = scmp.ne.s32.totalorder %s180, %s196
      %p198 = scmp.eq.s32.totalorder %s30, 0
      %p199 = por %p197, %p198
      %p200 = scmp.le.s32.totalorder 1, %s24
      %p201 = scmp.lt.s32.totalorder %s24, 3
      %p202 = pnand %p200, %p201
      %p203 = pneg %p202
      // Predicated region
      $region9: #{tpu_custom_call.1} parent=5 // pred_check
        _
      $region10: #{tpu_custom_call.1} parent=5 // pred_check_branch
        %205 = sbr.rel (%p202) target = $region12
      $region11: #{tpu_custom_call.1} parent=5 // pred_region
        %s206 = ssub.s32 %s24, 1
        // Predicated region
        $region13: #{tpu_custom_call.1} parent=11 // pred_check
          %p207 = pneg %p115
        $region14: #{tpu_custom_call.1} parent=11 // pred_check_branch
          %209 = sbr.rel (%p207) target = $region16
        $region15: #{tpu_custom_call.1} parent=11 // pred_region
          _
        $region16: #{tpu_custom_call.1} parent=11 // pred_fallthru
          _
        // Predicated region
        $region17: #{tpu_custom_call.1} parent=11 // pred_check
          %p210 = pneg %p136
        $region18: #{tpu_custom_call.1} parent=11 // pred_check_branch
          %212 = sbr.rel (%p210) target = $region20
        $region19: #{tpu_custom_call.1} parent=11 // pred_region
          _
        $region20: #{tpu_custom_call.1} parent=11 // pred_fallthru
          _
      $region12: #{tpu_custom_call.1} parent=5 // pred_fallthru
        _
      %p213 = scmp.lt.s32.totalorder %s24, 2
      // Predicated region
      $region21: #{tpu_custom_call.1} parent=5 // pred_check
        %p214 = pneg %p213
      $region22: #{tpu_custom_call.1} parent=5 // pred_check_branch
        %216 = sbr.rel (%p214) target = $region24
      $region23: #{tpu_custom_call.1} parent=5 // pred_region
        // Predicated region
        $region25: #{tpu_custom_call.1} parent=23 // pred_check
          %p217 = pneg %p58
        $region26: #{tpu_custom_call.1} parent=23 // pred_check_branch
          %219 = sbr.rel (%p217) target = $region28
        $region27: #{tpu_custom_call.1} parent=23 // pred_region
          %s220 = sand.u32 %s48, 1
          %s221 = scalar_lea.sflag [#allocation3], %s220
          %s222 = sand.u32 %s48, 1
          %s223 = smul.addr %s222, 16
          %s224 = scalar_lea.vmem [#allocation2], %s223
          %s226 = ssub.s32 256, 256
          %227 = vsyncadd %s221, %s226
          %s228 = smul.addr %s31, 8
          %s229 = sadd.s32 %s32, %s228
          %s230 = smul.addr %s229, 64
          %s231 = scalar_lea.hbm %s0, %s230
          %s232 = sshll.u32 %s224, 4
          %s233 = int_to_ptr.vmem [resolvable:$true] %s232
          %238 = dma.hbm_to_vmem [thread:$0]  %s231, 256, %s233, %s221, 128, 64, 4
        $region28: #{tpu_custom_call.1} parent=23 // pred_fallthru
          _
        // Predicated region
        $region29: #{tpu_custom_call.1} parent=23 // pred_check
          %p239 = pneg %p88
        $region30: #{tpu_custom_call.1} parent=23 // pred_check_branch
          %241 = sbr.rel (%p239) target = $region32
        $region31: #{tpu_custom_call.1} parent=23 // pred_region
          %s242 = sand.u32 %s78, 1
          %s243 = scalar_lea.sflag [#allocation6], %s242
          %s244 = sand.u32 %s78, 1
          %s245 = smul.addr %s244, 16
          %s246 = scalar_lea.vmem [#allocation5], %s245
          %s247 = sadd.s32 %s32, 1
          %s249 = ssub.s32 256, 256
          %250 = vsyncadd %s243, %s249
          %s251 = smul.addr %s31, 8
          %s252 = sadd.s32 %s247, %s251
          %s253 = smul.addr %s252, 64
          %s254 = scalar_lea.hbm %s1, %s253
          %s255 = sshll.u32 %s246, 4
          %s256 = int_to_ptr.vmem [resolvable:$true] %s255
          %261 = dma.hbm_to_vmem [thread:$0]  %s254, 256, %s256, %s243, 128, 64, 4
        $region32: #{tpu_custom_call.1} parent=23 // pred_fallthru
          _
      $region24: #{tpu_custom_call.1} parent=5 // pred_fallthru
        _
      %p262 = scmp.le.s32.totalorder 1, %s24
      %p263 = scmp.lt.s32.totalorder %s24, 3
      %p264 = pnand %p262, %p263
      %p265 = pneg %p264
      // Predicated region
      $region33: #{tpu_custom_call.1} parent=5 // pred_check
        _
      $region34: #{tpu_custom_call.1} parent=5 // pred_check_branch
        %267 = sbr.rel (%p264) target = $region36
      $region35: #{tpu_custom_call.1} parent=5 // pred_region
        %s268 = ssub.s32 %s24, 1
        %s269 = sand.u32 %s51, 1
        %s270 = scalar_lea.sflag [#allocation3], %s269
        %s271 = sand.u32 %s51, 1
        %s272 = smul.addr %s271, 16
        %s273 = scalar_lea.vmem [#allocation2], %s272
        // Predicated region
        $region37: #{tpu_custom_call.1} parent=35 // pred_check
          %p274 = pneg %p64
        $region38: #{tpu_custom_call.1} parent=35 // pred_check_branch
          %276 = sbr.rel (%p274) target = $region40
        $region39: #{tpu_custom_call.1} parent=35 // pred_region
          %277 = dma.done %s270, 256
        $region40: #{tpu_custom_call.1} parent=35 // pred_fallthru
          _
        %s278 = sand.u32 %s81, 1
        %s279 = scalar_lea.sflag [#allocation6], %s278
        %s280 = sand.u32 %s81, 1
        %s281 = smul.addr %s280, 16
        %s282 = scalar_lea.vmem [#allocation5], %s281
        // Predicated region
        $region41: #{tpu_custom_call.1} parent=35 // pred_check
          %p283 = pneg %p94
        $region42: #{tpu_custom_call.1} parent=35 // pred_check_branch
          %285 = sbr.rel (%p283) target = $region44
        $region43: #{tpu_custom_call.1} parent=35 // pred_region
          %286 = dma.done %s279, 256
        $region44: #{tpu_custom_call.1} parent=35 // pred_fallthru
          _
        %s287 = sand.u32 %s51, 1
        %s288 = scalar_lea.sflag [#allocation3], %s287
        %s289 = sand.u32 %s51, 1
        %s290 = smul.addr %s289, 16
        %s291 = scalar_lea.vmem [#allocation2], %s290
        %p292 = pneg %p64
        %p293 = pneg %p61
        %s294 = sand.u32 %s81, 1
        %s295 = scalar_lea.sflag [#allocation6], %s294
        %s296 = sand.u32 %s81, 1
        %s297 = smul.addr %s296, 16
        %s298 = scalar_lea.vmem [#allocation5], %s297
        %p299 = pneg %p94
        %p300 = pneg %p91
        %p301 = pneg %p115
        %p302 = pneg %p112
        %p303 = pneg %p136
        %p304 = pneg %p133
        %p305 = pneg %p164
        %p306 = pneg %p161
        %s307 = sand.u32 %s151, 1
        %s308 = scalar_lea.sflag [#allocation4], %s307
        %s309 = sand.u32 %s151, 1
        %s310 = smul.addr %s309, 2
        %s311 = scalar_lea.vmem [#allocation7], %s310
        %p312 = pneg %p192
        %p313 = pneg %p189
        %s314 = sand.u32 %s179, 1
        %s315 = scalar_lea.sflag [#allocation9], %s314
        %s316 = sand.u32 %s179, 1
        %s317 = smul.addr %s316, 2
        %s318 = scalar_lea.vmem [#allocation8], %s317
        %s319 = sadd.s32 %s34, 1
        %v321 = vld [vmem:[%s273] sm:$0xf]
        %v322 = vld [vmem:[%s273 + $0x4] sm:$0xf]
        %v323 = vld [vmem:[%s273 + $0x8] sm:$0xf]
        %v324 = vld [vmem:[%s273 + $0xc] sm:$0xf]
        %v325 = vld [vmem:[%s2] sm:$0x3]
        %v326 = vld [vmem:[%s282] sm:$0xf]
        %v327 = vld [vmem:[%s282 + $0x4] sm:$0xf]
        %v328 = vld [vmem:[%s282 + $0x8] sm:$0xf]
        %v329 = vld [vmem:[%s282 + $0xc] sm:$0xf]
        %v334 = vunpack.c.l.b16 %v321
        %v335 = vunpack.c.l.b16 %v322
        %v336 = vunpack.c.l.b16 %v323
        %v337 = vunpack.c.l.b16 %v324
        %v338 = vpack.c.b16 %v335, %v334
        %v339 = vpack.c.b16 %v337, %v336
        %v344 = vunpack.c.l.b16 %v326
        %v345 = vunpack.c.l.b16 %v327
        %v346 = vunpack.c.l.b16 %v328
        %v347 = vunpack.c.l.b16 %v329
        %v348 = vpack.c.b16 %v345, %v344
        %v349 = vpack.c.b16 %v347, %v346
        %s350 = scalar_lea.vmem %s2, 2
        %v351 = vld [vmem:[%s350] sm:$0x3]
        %352 = vrot.lane.b32.xlu0 %v338, 127
        %v353 = vpop.permute.xlu0 %352
        %354 = vrot.lane.b32.xlu0 %v348, 127
        %v355 = vpop.permute.xlu0 %354
        %356 = vrot.lane.b32.xlu0 %v339, 127
        %v357 = vpop.permute.xlu0 %356
        %358 = vrot.lane.b32.xlu0 %v349, 127
        %v359 = vpop.permute.xlu0 %358
        %vm360 = vcmask 1039360
        %v361 = vsel %vm360, %v353, %v355
        %v362 = vsel %vm360, %v357, %v359
        %vm365 = vcmask 261120
        %v367 = vsel %vm365, %v351, 0
        %369 = vmatprep.subr.bf16.mxu0 0
        %370 = vmatpush1.bf16.msra.mxu0 0
        %371 = vmatprep.subr.bf16.mxu0 0
        %372 = vmatpush1.bf16.msra.mxu0 0
        %373 = vmatprep.subr.bf16.mxu0 0
        %374 = vmatpush1.bf16.msra.mxu0 0
        %375 = vmatprep.subr.bf16.mxu0 0
        %376 = vmatpush1.bf16.msra.mxu0 0
        %377 = vmatprep.subr.bf16.mxu0 0
        %378 = vmatpush1.bf16.msra.mxu0 0
        %379 = vmatprep.subr.bf16.mxu0 0
        %380 = vmatpush1.bf16.msra.mxu0 0
        %381 = vmatprep.subr.bf16.mxu0 0
        %382 = vmatpush1.bf16.msra.mxu0 %v362
        %383 = vmatprep.subr.bf16.mxu0 0
        %384 = vmatpush1.bf16.msra.mxu0 %v361
        %385 = vmatprep.subr.bf16.mxu0 0
        %386 = vmatpush2.bf16.msra.mxu0 0
        %387 = vmatprep.subr.bf16.mxu0 0
        %388 = vmatpush2.bf16.msra.mxu0 0
        %389 = vmatprep.subr.bf16.mxu0 0
        %390 = vmatpush2.bf16.msra.mxu0 0
        %391 = vmatprep.subr.bf16.mxu0 0
        %392 = vmatpush2.bf16.msra.mxu0 0
        %393 = vmatprep.subr.bf16.mxu0 0
        %394 = vmatpush2.bf16.msra.mxu0 0
        %395 = vmatprep.subr.bf16.mxu0 0
        %396 = vmatpush2.bf16.msra.mxu0 0
        %397 = vmatprep.subr.bf16.mxu0 0
        %398 = vmatpush2.bf16.msra.mxu0 0
        %399 = vmatprep.subr.bf16.mxu0 0
        %400 = vmatpush2.bf16.msra.mxu0 0
        %401 = vmatprep.mubr.bf16.mxu0 0
        %402 = vmatmul.mubr.bf16.gmra.mxu0 %v367
        %v403 = vpop.f32.mrf.mxu0
        %v404 = vadd.f32 0.0, %v403
        %v405 = vpop.f32.mrf.mxu0
        %v406 = vpop.f32.mrf.mxu0
        %v407 = vpop.f32.mrf.mxu0
        %408 = vdwg.mxu0
        %v412 = vsel %vm365, %v325, 0
        %414 = vmatprep.subr.bf16.mxu0 0
        %415 = vmatpush1.bf16.msra.mxu0 0
        %416 = vmatprep.subr.bf16.mxu0 0
        %417 = vmatpush1.bf16.msra.mxu0 0
        %418 = vmatprep.subr.bf16.mxu0 0
        %419 = vmatpush1.bf16.msra.mxu0 0
        %420 = vmatprep.subr.bf16.mxu0 0
        %421 = vmatpush1.bf16.msra.mxu0 0
        %422 = vmatprep.subr.bf16.mxu0 0
        %423 = vmatpush1.bf16.msra.mxu0 0
        %424 = vmatprep.subr.bf16.mxu0 0
        %425 = vmatpush1.bf16.msra.mxu0 0
        %426 = vmatprep.subr.bf16.mxu0 0
        %427 = vmatpush1.bf16.msra.mxu0 %v339
        %428 = vmatprep.subr.bf16.mxu0 0
        %429 = vmatpush1.bf16.msra.mxu0 %v338
        %430 = vmatprep.subr.bf16.mxu0 0
        %431 = vmatpush2.bf16.msra.mxu0 0
        %432 = vmatprep.subr.bf16.mxu0 0
        %433 = vmatpush2.bf16.msra.mxu0 0
        %434 = vmatprep.subr.bf16.mxu0 0
        %435 = vmatpush2.bf16.msra.mxu0 0
        %436 = vmatprep.subr.bf16.mxu0 0
        %437 = vmatpush2.bf16.msra.mxu0 0
        %438 = vmatprep.subr.bf16.mxu0 0
        %439 = vmatpush2.bf16.msra.mxu0 0
        %440 = vmatprep.subr.bf16.mxu0 0
        %441 = vmatpush2.bf16.msra.mxu0 0
        %442 = vmatprep.subr.bf16.mxu0 0
        %443 = vmatpush2.bf16.msra.mxu0 0
        %444 = vmatprep.subr.bf16.mxu0 0
        %445 = vmatpush2.bf16.msra.mxu0 0
        %446 = vmatprep.mubr.bf16.mxu0 0
        %447 = vmatmul.mubr.bf16.gmra.mxu0 %v412
        %v448 = vpop.f32.mrf.mxu0
        %v449 = vadd.f32 %v404, %v448
        %v450 = vpop.f32.mrf.mxu0
        %v451 = vpop.f32.mrf.mxu0
        %v452 = vpop.f32.mrf.mxu0
        %453 = vdwg.mxu0
        %s454 = scalar_lea.vmem %s2, 4
        %v455 = vld [vmem:[%s454] sm:$0x3]
        %456 = vrot.lane.b32.xlu0 %v338, 126
        %v457 = vpop.permute.xlu0 %456
        %458 = vrot.lane.b32.xlu0 %v348, 126
        %v459 = vpop.permute.xlu0 %458
        %460 = vrot.lane.b32.xlu0 %v339, 126
        %v461 = vpop.permute.xlu0 %460
        %462 = vrot.lane.b32.xlu0 %v349, 126
        %v463 = vpop.permute.xlu0 %462
        %vm464 = vcmask 1031168
        %v465 = vsel %vm464, %v457, %v459
        %v466 = vsel %vm464, %v461, %v463
        %v470 = vsel %vm365, %v455, 0
        %472 = vmatprep.subr.bf16.mxu0 0
        %473 = vmatpush1.bf16.msra.mxu0 0
        %474 = vmatprep.subr.bf16.mxu0 0
        %475 = vmatpush1.bf16.msra.mxu0 0
        %476 = vmatprep.subr.bf16.mxu0 0
        %477 = vmatpush1.bf16.msra.mxu0 0
        %478 = vmatprep.subr.bf16.mxu0 0
        %479 = vmatpush1.bf16.msra.mxu0 0
        %480 = vmatprep.subr.bf16.mxu0 0
        %481 = vmatpush1.bf16.msra.mxu0 0
        %482 = vmatprep.subr.bf16.mxu0 0
        %483 = vmatpush1.bf16.msra.mxu0 0
        %484 = vmatprep.subr.bf16.mxu0 0
        %485 = vmatpush1.bf16.msra.mxu0 %v466
        %486 = vmatprep.subr.bf16.mxu0 0
        %487 = vmatpush1.bf16.msra.mxu0 %v465
        %488 = vmatprep.subr.bf16.mxu0 0
        %489 = vmatpush2.bf16.msra.mxu0 0
        %490 = vmatprep.subr.bf16.mxu0 0
        %491 = vmatpush2.bf16.msra.mxu0 0
        %492 = vmatprep.subr.bf16.mxu0 0
        %493 = vmatpush2.bf16.msra.mxu0 0
        %494 = vmatprep.subr.bf16.mxu0 0
        %495 = vmatpush2.bf16.msra.mxu0 0
        %496 = vmatprep.subr.bf16.mxu0 0
        %497 = vmatpush2.bf16.msra.mxu0 0
        %498 = vmatprep.subr.bf16.mxu0 0
        %499 = vmatpush2.bf16.msra.mxu0 0
        %500 = vmatprep.subr.bf16.mxu0 0
        %501 = vmatpush2.bf16.msra.mxu0 0
        %502 = vmatprep.subr.bf16.mxu0 0
        %503 = vmatpush2.bf16.msra.mxu0 0
        %504 = vmatprep.mubr.bf16.mxu0 0
        %505 = vmatmul.mubr.bf16.gmra.mxu0 %v470
        %v506 = vpop.f32.mrf.mxu0
        %v507 = vadd.f32 0.0, %v506
        %v508 = vpop.f32.mrf.mxu0
        %v509 = vpop.f32.mrf.mxu0
        %v510 = vpop.f32.mrf.mxu0
        %511 = vdwg.mxu0
        %v512 = vadd.f32 %v449, %v507
        %s513 = scalar_lea.vmem %s2, 6
        %v514 = vld [vmem:[%s513] sm:$0x3]
        %515 = vrot.lane.b32.xlu0 %v338, 125
        %v516 = vpop.permute.xlu0 %515
        %517 = vrot.lane.b32.xlu0 %v348, 125
        %v518 = vpop.permute.xlu0 %517
        %519 = vrot.lane.b32.xlu0 %v339, 125
        %v520 = vpop.permute.xlu0 %519
        %521 = vrot.lane.b32.xlu0 %v349, 125
        %v522 = vpop.permute.xlu0 %521
        %vm523 = vcmask 1022976
        %v524 = vsel %vm523, %v516, %v518
        %v525 = vsel %vm523, %v520, %v522
        %v529 = vsel %vm365, %v514, 0
        %531 = vmatprep.subr.bf16.mxu0 0
        %532 = vmatpush1.bf16.msra.mxu0 0
        %533 = vmatprep.subr.bf16.mxu0 0
        %534 = vmatpush1.bf16.msra.mxu0 0
        %535 = vmatprep.subr.bf16.mxu0 0
        %536 = vmatpush1.bf16.msra.mxu0 0
        %537 = vmatprep.subr.bf16.mxu0 0
        %538 = vmatpush1.bf16.msra.mxu0 0
        %539 = vmatprep.subr.bf16.mxu0 0
        %540 = vmatpush1.bf16.msra.mxu0 0
        %541 = vmatprep.subr.bf16.mxu0 0
        %542 = vmatpush1.bf16.msra.mxu0 0
        %543 = vmatprep.subr.bf16.mxu0 0
        %544 = vmatpush1.bf16.msra.mxu0 %v525
        %545 = vmatprep.subr.bf16.mxu0 0
        %546 = vmatpush1.bf16.msra.mxu0 %v524
        %547 = vmatprep.subr.bf16.mxu0 0
        %548 = vmatpush2.bf16.msra.mxu0 0
        %549 = vmatprep.subr.bf16.mxu0 0
        %550 = vmatpush2.bf16.msra.mxu0 0
        %551 = vmatprep.subr.bf16.mxu0 0
        %552 = vmatpush2.bf16.msra.mxu0 0
        %553 = vmatprep.subr.bf16.mxu0 0
        %554 = vmatpush2.bf16.msra.mxu0 0
        %555 = vmatprep.subr.bf16.mxu0 0
        %556 = vmatpush2.bf16.msra.mxu0 0
        %557 = vmatprep.subr.bf16.mxu0 0
        %558 = vmatpush2.bf16.msra.mxu0 0
        %559 = vmatprep.subr.bf16.mxu0 0
        %560 = vmatpush2.bf16.msra.mxu0 0
        %561 = vmatprep.subr.bf16.mxu0 0
        %562 = vmatpush2.bf16.msra.mxu0 0
        %563 = vmatprep.mubr.bf16.mxu0 0
        %564 = vmatmul.mubr.bf16.gmra.mxu0 %v529
        %v565 = vpop.f32.mrf.mxu0
        %v566 = vadd.f32 0.0, %v565
        %v567 = vpop.f32.mrf.mxu0
        %v568 = vpop.f32.mrf.mxu0
        %v569 = vpop.f32.mrf.mxu0
        %570 = vdwg.mxu0
        %v571 = vadd.f32 %v512, %v566
        %v572 = vld [vmem:[%s3] sm:$0xf]
        %574 = vset.pattern.permute.xlu0 0
        %575 = vperm.xlu0 %574, %v572
        %v576 = vpop.permute.xlu0 %575
        %v578 = vadd.f32 %v571, %v576
        %v579 = vpack.c.bf16 %v578, %v578
        %580 = vst [vmem:[%s311] sm:$0x3] %v579
        %v581 = vlaneseq
        %v582 = vand.u32 %v581, 127
        %s583 = smul.u32 %s34, 128
        %s584 = ssub.s32 16, %s583
        %v585 = vstv %s584
        %vm586 = vcmp.lt.s32.totalorder %v582, %v585
        %v587 = vxor.u32 %v578, 2147483648
        %v588 = vmul.f32 %v587, 1.442695
        %v589 = vpow.pop %v588
        %v590 = vadd.f32 %v589, 1.0
        %v591 = vrcp.pop %v590
        %v592 = vmul.f32 1.0, %v591
        %v593 = vmul.f32 %v578, %v592
        %v594 = vsel %vm586, 1, 0
        %vm595 = vcmp.eq.s32.totalorder %v594, 1
        %v596 = vsel %vm595, %v593, 0.0
        %v597 = vpack.c.bf16 %v596, %v596
        %598 = vst [vmem:[%s318] sm:$0x3] %v597
        %s599 = sand.u32 %s151, 1
        %s600 = scalar_lea.sflag [#allocation4], %s599
        %s601 = sand.u32 %s151, 1
        %s602 = smul.addr %s601, 2
        %s603 = scalar_lea.vmem [#allocation7], %s602
        %s604 = sand.u32 %s179, 1
        %s605 = scalar_lea.sflag [#allocation9], %s604
        %s606 = sand.u32 %s179, 1
        %s607 = smul.addr %s606, 2
        %s608 = scalar_lea.vmem [#allocation8], %s607
        // Predicated region
        $region45: #{tpu_custom_call.1} parent=35 // pred_check
          %p609 = pneg %p161
        $region46: #{tpu_custom_call.1} parent=35 // pred_check_branch
          %611 = sbr.rel (%p609) target = $region48
        $region47: #{tpu_custom_call.1} parent=35 // pred_region
          %s613 = ssub.s32 32, 32
          %614 = vsyncadd %s600, %s613
          %s615 = sadd.s32 %s34, %s33
          %s616 = smul.addr %s615, 32
          %s617 = scalar_lea.hbm %s4, %s616
          %s619 = sshll.u32 %s603, 4
          %s620 = int_to_ptr.vmem [resolvable:$true] %s619
          %622 = dma.vmem_to_hbm [thread:$0]  %s620, 32, %s617, %s600
        $region48: #{tpu_custom_call.1} parent=35 // pred_fallthru
          _
        // Predicated region
        $region49: #{tpu_custom_call.1} parent=35 // pred_check
          %p623 = pneg %p189
        $region50: #{tpu_custom_call.1} parent=35 // pred_check_branch
          %625 = sbr.rel (%p623) target = $region52
        $region51: #{tpu_custom_call.1} parent=35 // pred_region
          %s627 = ssub.s32 32, 32
          %628 = vsyncadd %s605, %s627
          %s629 = sadd.s32 %s34, %s33
          %s630 = smul.addr %s629, 32
          %s631 = scalar_lea.hbm %s5, %s630
          %s633 = sshll.u32 %s608, 4
          %s634 = int_to_ptr.vmem [resolvable:$true] %s633
          %636 = dma.vmem_to_hbm [thread:$0]  %s634, 32, %s631, %s605
        $region52: #{tpu_custom_call.1} parent=35 // pred_fallthru
          _
      $region36: #{tpu_custom_call.1} parent=5 // pred_fallthru
        _
      %p637 = scmp.le.s32.totalorder 2, %s24
      // Predicated region
      $region53: #{tpu_custom_call.1} parent=5 // pred_check
        %p638 = pneg %p637
      $region54: #{tpu_custom_call.1} parent=5 // pred_check_branch
        %640 = sbr.rel (%p638) target = $region56
      $region55: #{tpu_custom_call.1} parent=5 // pred_region
        %s641 = ssub.s32 %s24, 2
        // Predicated region
        $region57: #{tpu_custom_call.1} parent=55 // pred_check
          %p642 = pneg %p167
        $region58: #{tpu_custom_call.1} parent=55 // pred_check_branch
          %644 = sbr.rel (%p642) target = $region60
        $region59: #{tpu_custom_call.1} parent=55 // pred_region
          %s645 = sand.u32 %s152, 1
          %s646 = scalar_lea.sflag [#allocation4], %s645
          %s647 = sand.u32 %s152, 1
          %s648 = smul.addr %s647, 2
          %s649 = scalar_lea.vmem [#allocation7], %s648
          %650 = dma.done %s646, 32
        $region60: #{tpu_custom_call.1} parent=55 // pred_fallthru
          _
        // Predicated region
        $region61: #{tpu_custom_call.1} parent=55 // pred_check
          %p651 = pneg %p195
        $region62: #{tpu_custom_call.1} parent=55 // pred_check_branch
          %653 = sbr.rel (%p651) target = $region64
        $region63: #{tpu_custom_call.1} parent=55 // pred_region
          %s654 = sand.u32 %s180, 1
          %s655 = scalar_lea.sflag [#allocation9], %s654
          %s656 = sand.u32 %s180, 1
          %s657 = smul.addr %s656, 2
          %s658 = scalar_lea.vmem [#allocation8], %s657
          %659 = dma.done %s655, 32
        $region64: #{tpu_custom_call.1} parent=55 // pred_fallthru
          _
      $region56: #{tpu_custom_call.1} parent=5 // pred_fallthru
        _
    $region6: #{tpu_custom_call.1} parent=1 // loop_footer
      %s28 = sadd.s32 1, %s24
    $region7: #{tpu_custom_call.1} parent=1 // loop_footer_branch
      %23 = sbr.rel target = $region3
    $region8: #{tpu_custom_call.1} parent=1 // loop_exit
      _
    %660 = vsyncpa [#allocation3], 1
    %s661 = scalar_lea.sflag [#allocation3], 1
    %662 = vsyncpa %s661, 1
    %663 = vsyncpa [#allocation6], 1
    %s664 = scalar_lea.sflag [#allocation6], 1
    %665 = vsyncpa %s664, 1
    %666 = vsyncpa [#allocation4], 1
    %s667 = scalar_lea.sflag [#allocation4], 1
    %668 = vsyncpa %s667, 1
    %669 = vsyncpa [#allocation9], 1
    %s670 = scalar_lea.sflag [#allocation9], 1
    %671 = vsyncpa %s670, 1

</llo_original>
